<compile_context>
chip_gen: v7x
topology: tpu7x:2x2x1
jax: 0.10.0
libtpu: 0.0.40
codegen_flags: <defaults>
</compile_context>

<pallas_src>
import math

import numpy as np
import jax
import jax.numpy as jnp
from jax import lax
from jax.experimental import pallas as pl
from jax.experimental.pallas import tpu as pltpu


def _round_up(x, m):
    return ((x + m - 1) // m) * m


def _vmem_limits():
    """Generation-aware VMEM working-set budget and scoped limit."""
    try:
        cap = int(pltpu.get_tpu_info().vmem_capacity_bytes)
    except Exception:
        cap = 64 * 1024 * 1024            # conservative fallback (v7x per-core)
    return int(cap * 0.40), int(cap * 0.70)


def _padded_to_src(idx, pad, in_size, up_size):
    """Map coords of the (nearest-upsampled + reflection-padded) axis to source coords."""
    u = idx.astype(np.int64) - pad
    u = np.where(u < 0, -u, u)                               # reflect (left)
    u = np.where(u >= up_size, 2 * (up_size - 1) - u, u)     # reflect (right)
    if up_size == in_size:
        src = u
    else:
        # torch 'nearest': src = floor(dst * in / out)
        src = np.floor(u.astype(np.float64) * (float(in_size) / float(up_size)))
    return np.clip(src, 0, in_size - 1).astype(np.int32)


def _choose_tile_h(Ho, st, K, H, up_h, CW, CoWo, budget):
    """Largest multiple-of-8 output-row tile whose VMEM working set fits the budget."""
    def ts_for(th):
        span = int(math.ceil(((th - 1) * st + K) * H / max(up_h, 1))) + 2
        return _round_up(span, 8)

    def est(th):
        ts = ts_for(th)
        e_blk = K * th * ts            # row-expansion matrices
        in_blk = ts * CW               # gathered source rows
        out_blk = th * CoWo            # output tile
        w_blk = K * CW * CoWo          # folded weights (whole)
        inter = th * CW + 2 * out_blk  # row-expanded slab + accumulator
        return 4 * (2 * (e_blk + in_blk + out_blk) + 2 * w_blk + inter)

    th = min(_round_up(Ho, 8), 2048)
    while th > 8 and est(th) > budget:
        th -= 8
    return th


# --------------------------------------------------------------------------
# Pallas kernel: per output-row tile,  out = sum_kh (E[kh] @ src) @ B[kh] + bias
# --------------------------------------------------------------------------
def _make_kernel(K, TH, TS, CW, CoWo):
    def kernel(e_ref, x_ref, w_ref, bias_ref, o_ref):
        # e_ref:    (1, K, TH, TS)   per-tile 0/1 row-expansion matrices
        # x_ref:    (1, TS, CW)      gathered source rows, lanes = Cin*W
        # w_ref:    (K, CW, CoWo)    folded weights (upsample/pad/stride/kw in W)
        # bias_ref: (1, CoWo)        bias replicated per output lane
        # o_ref:    (1, TH, CoWo)    lane-dense output tile
        src = x_ref[0].astype(jnp.float32)                 # (TS, CW)
        acc = jnp.zeros((TH, CoWo), dtype=jnp.float32)
        for kh in range(K):
            rows = jnp.dot(e_ref[0, kh], src,
                           preferred_element_type=jnp.float32)        # (TH, CW)
            acc = acc + jnp.dot(rows, w_ref[kh],
                                preferred_element_type=jnp.float32)   # (TH, CoWo)
        o_ref[0] = (acc + bias_ref[...]).astype(o_ref.dtype)
    return kernel


# --------------------------------------------------------------------------
# Full forward: nearest upsample -> ReflectionPad2d(K//2) -> Conv2d(K, stride).
# --------------------------------------------------------------------------
def upsample_conv_forward(x, weight_oihw, bias, *, kernel_size, stride, upsample):
    N, Cin, H, W = x.shape
    Cout = weight_oihw.shape[0]
    K, st = int(kernel_size), int(stride)
    pad = K // 2

    if upsample:
        scale = float(upsample)
        up_h = int(math.floor(H * scale))
        up_w = int(math.floor(W * scale))
    else:
        up_h, up_w = H, W
    # Single-pass reflection is only valid when pad <= size - 1.
    assert pad <= up_h - 1 and pad <= up_w - 1, "reflection pad too large for input"

    Hp, Wp = up_h + 2 * pad, up_w + 2 * pad
    Ho = (Hp - K) // st + 1
    Wo = (Wp - K) // st + 1
    CW, CoWo = Cin * W, Cout * Wo

    budget, vmem_limit = _vmem_limits()
    TH = _choose_tile_h(Ho, st, K, H, up_h, CW, CoWo, budget)
    nH = -(-Ho // TH)

    # ---- Column fold: B[kh, ci*W + c, co*Wo + j] (upsample + pad + stride + kw). ----
    col_src = _padded_to_src(np.arange(Wp), pad, W, up_w)               # (Wp,)
    cols = np.arange(Wo)[None, :] * st + np.arange(K)[:, None]          # (K, Wo) padded col per (kw, j)
    M = (np.arange(W)[:, None, None] ==
         col_src[cols][None, :, :]).astype(np.float32)                  # (W, K, Wo)
    Bmat = jnp.einsum("oihk,ckj->hicoj",
                      weight_oihw.astype(jnp.float32), jnp.asarray(M))  # (K, Cin, W, Cout, Wo)
    Bmat = Bmat.reshape(K, CW, CoWo)

    # ---- Row fold: per-tile source window + 0/1 expansion matrices E. ----
    row_src = _padded_to_src(np.arange(Hp), pad, H, up_h)               # (Hp,)
    r_glob = np.clip(np.arange(nH * TH), 0, Ho - 1).reshape(nH, TH)
    u_rows = r_glob[:, :, None] * st + np.arange(K)[None, None, :]      # (nH, TH, K) padded rows
    s_rows = row_src[u_rows]                                            # (nH, TH, K) source rows
    src_lo = s_rows.reshape(nH, -1).min(axis=1)                         # (nH,)
    TS = _round_up(int((s_rows.reshape(nH, -1).max(axis=1) - src_lo).max()) + 1, 8)
    local = s_rows - src_lo[:, None, None]                              # (nH, TH, K) in [0, TS)
    E = (local[..., None] == np.arange(TS)).astype(np.float32)          # (nH, TH, K, TS)
    E = np.ascontiguousarray(E.transpose(0, 2, 1, 3))                   # (nH, K, TH, TS)
    gather_rows = np.clip(src_lo[:, None] + np.arange(TS)[None, :],
                          0, H - 1).reshape(-1).astype(np.int32)        # (nH*TS,)

    # ---- XLA-side prep: only a row gather at ORIGINAL width (~|x| bytes). ----
    xr = jnp.transpose(x, (0, 2, 1, 3)).reshape(N, H, CW)               # (N, H, Cin*W)
    xg = jnp.take(xr, jnp.asarray(gather_rows), axis=1)                 # (N, nH*TS, CW)

    bias_lane = jnp.repeat(bias.astype(jnp.float32), Wo).reshape(1, CoWo)

    kernel = _make_kernel(K, TH, TS, CW, CoWo)
    out_slab = pl.pallas_call(
        kernel,
        out_shape=jax.ShapeDtypeStruct((N, nH * TH, CoWo), x.dtype),
        grid_spec=pltpu.PrefetchScalarGridSpec(
            num_scalar_prefetch=0,
            grid=(N, nH),
            in_specs=[
                pl.BlockSpec((1, K, TH, TS), lambda n, i: (i, 0, 0, 0)),   # E (per tile)
                pl.BlockSpec((1, TS, CW), lambda n, i: (n, i, 0)),         # source rows
                pl.BlockSpec((K, CW, CoWo), lambda n, i: (0, 0, 0)),       # folded weights
                pl.BlockSpec((1, CoWo), lambda n, i: (0, 0)),              # bias per lane
            ],
            out_specs=pl.BlockSpec((1, TH, CoWo), lambda n, i: (n, i, 0)),
        ),
        compiler_params=pltpu.CompilerParams(
            dimension_semantics=("parallel", "parallel"),
            vmem_limit_bytes=vmem_limit,
        ),
    )(jnp.asarray(E), xg, Bmat, bias_lane)

    # Lane-dense slab -> NCHW (layout plumbing only).
    out = out_slab.reshape(N, nH * TH, Cout, Wo)
    out = jnp.transpose(out, (0, 2, 1, 3))[:, :, :Ho, :]
    return out


class UpsampleConvLayerPallas:
    """JAX/Pallas equivalent of the PyTorch UpsampleConvLayer (forward only)."""

    def __init__(self, in_channels, out_channels, kernel_size, stride,
                 upsample=None, key=None, dtype=jnp.float32):
        self.in_channels = in_channels
        self.out_channels = out_channels
        self.kernel_size = kernel_size
        self.stride = stride
        self.upsample = upsample
        self.reflection_padding = kernel_size // 2

        if key is None:
            key = jax.random.PRNGKey(0)
        kw_key, kb_key = jax.random.split(key)
        # PyTorch Conv2d default init: uniform(-1/sqrt(fan_in), 1/sqrt(fan_in))
        fan_in = in_channels * kernel_size * kernel_size
        bound = 1.0 / math.sqrt(fan_in)
        self.weight_oihw = jax.random.uniform(
            kw_key, (out_channels, in_channels, kernel_size, kernel_size),
            dtype=dtype, minval=-bound, maxval=bound)
        self.bias = jax.random.uniform(
            kb_key, (out_channels,), dtype=dtype, minval=-bound, maxval=bound)

    def __call__(self, x_nchw):
        return upsample_conv_forward(
            x_nchw, self.weight_oihw, self.bias,
            kernel_size=self.kernel_size, stride=self.stride,
            upsample=self.upsample)


def _reference_forward(layer, x_nchw):
    """Pure-JAX (XLA conv) reference for correctness checking (integer upsample)."""
    x_in = x_nchw
    if layer.upsample:
        s = int(layer.upsample)
        x_in = jnp.repeat(jnp.repeat(x_in, s, axis=2), s, axis=3)
    p = layer.reflection_padding
    if p > 0:
        x_in = jnp.pad(x_in, ((0, 0), (0, 0), (p, p), (p, p)), mode="reflect")
    out = lax.conv_general_dilated(
        x_in, layer.weight_oihw,
        window_strides=(layer.stride, layer.stride),
        padding="VALID",
        dimension_numbers=("NCHW", "OIHW", "NCHW"),
        precision=lax.Precision.HIGHEST)
    return out + layer.bias.reshape(1, -1, 1, 1)


if __name__ == "__main__":
    key = jax.random.PRNGKey(0)
    k_x, k_params = jax.random.split(key)

    # Shapes consistent with the module: batch=2, in_channels=4, out_channels=8,
    # spatial=16, kernel_size=3, stride=1, upsample=2.
    N, Cin, H, W = 2, 4, 16, 16
    x = jax.random.normal(k_x, (N, Cin, H, W), dtype=jnp.float32)

    layer = UpsampleConvLayerPallas(
        in_channels=Cin, out_channels=8, kernel_size=3, stride=1,
        upsample=2, key=k_params)

    fwd = jax.jit(lambda inp: layer(inp))
    out = jax.block_until_ready(fwd(x))

    ref = jax.block_until_ready(_reference_forward(layer, x))
    assert out.shape == ref.shape, (out.shape, ref.shape)
    # MXU matmul precision (f32-on-MXU) is slightly looser than the HIGHEST-precision
    # XLA reference; 3e-2 comfortably bounds it for O(1) activations.
    max_err = float(jnp.max(jnp.abs(out - ref)))
    assert jnp.allclose(out, ref, atol=3e-2, rtol=3e-2), max_err

    print("KERNEL_OK")
</pallas_src>

<mosaic_0001>
module attributes {stable_mosaic.version = 11 : i64} {
  func.func @kernel(%arg0: i32, %arg1: i32, %arg2: memref<1x3x32x16xf32, #tpu.memory_space<vmem>>, %arg3: memref<1x16x64xf32, #tpu.memory_space<vmem>>, %arg4: memref<3x64x256xf32, #tpu.memory_space<vmem>>, %arg5: memref<1x256xf32, #tpu.memory_space<vmem>>, %arg6: memref<1x32x256xf32, #tpu.memory_space<vmem>>) attributes {dimension_semantics = [#tpu.dimension_semantics<parallel>, #tpu.dimension_semantics<parallel>], iteration_bounds = array<i64: 2, 1>, scalar_prefetch = 0 : i64, scratch_operands = 0 : i64, tpu.core_type = #tpu.core_type<tc>, window_params = [{transform_indices = @transform_0, window_bounds = array<i64: 1, 3, 32, 16>}, {transform_indices = @transform_1, window_bounds = array<i64: 1, 16, 64>}, {pipeline_mode = #tpu.pipeline_mode<synchronous>, transform_indices = @transform_2, window_bounds = array<i64: 3, 64, 256>}, {pipeline_mode = #tpu.pipeline_mode<synchronous>, transform_indices = @transform_3, window_bounds = array<i64: 1, 256>}, {transform_indices = @transform_4, window_bounds = array<i64: 1, 32, 256>}]} {
    %c0 = arith.constant 0 : index
    %c0_0 = arith.constant 0 : index
    %c0_1 = arith.constant 0 : index
    %0 = vector.load %arg3[%c0, %c0_0, %c0_1] : memref<1x16x64xf32, #tpu.memory_space<vmem>>, vector<1x16x64xf32>
    %1 = vector.shape_cast %0 : vector<1x16x64xf32> to vector<16x64xf32>
    %cst = arith.constant 0.000000e+00 : f32
    %2 = vector.broadcast %cst : f32 to vector<32x256xf32>
    %c0_2 = arith.constant 0 : index
    %c0_3 = arith.constant 0 : index
    %c0_4 = arith.constant 0 : index
    %c0_5 = arith.constant 0 : index
    %3 = vector.load %arg2[%c0_2, %c0_3, %c0_4, %c0_5] : memref<1x3x32x16xf32, #tpu.memory_space<vmem>>, vector<1x1x32x16xf32>
    %4 = vector.shape_cast %3 : vector<1x1x32x16xf32> to vector<32x16xf32>
    %cst_6 = arith.constant dense<0.000000e+00> : vector<32x64xf32>
    %5 = tpu.matmul %4, %1, %cst_6 {dimension_numbers = #tpu.dot_dimension_numbers<[1], [0], [0], [1], [0, 0, 1, 1], [], []>} : vector<32x16xf32>, vector<16x64xf32>, vector<32x64xf32> -> vector<32x64xf32>
    %c0_7 = arith.constant 0 : index
    %c0_8 = arith.constant 0 : index
    %c0_9 = arith.constant 0 : index
    %6 = vector.load %arg4[%c0_7, %c0_8, %c0_9] : memref<3x64x256xf32, #tpu.memory_space<vmem>>, vector<1x64x256xf32>
    %7 = vector.shape_cast %6 : vector<1x64x256xf32> to vector<64x256xf32>
    %cst_10 = arith.constant dense<0.000000e+00> : vector<32x256xf32>
    %8 = tpu.matmul %5, %7, %cst_10 {dimension_numbers = #tpu.dot_dimension_numbers<[1], [0], [0], [1], [0, 0, 1, 1], [], []>} : vector<32x64xf32>, vector<64x256xf32>, vector<32x256xf32> -> vector<32x256xf32>
    %9 = arith.addf %2, %8 : vector<32x256xf32>
    %c0_11 = arith.constant 0 : index
    %c1 = arith.constant 1 : index
    %c0_12 = arith.constant 0 : index
    %c0_13 = arith.constant 0 : index
    %10 = vector.load %arg2[%c0_11, %c1, %c0_12, %c0_13] : memref<1x3x32x16xf32, #tpu.memory_space<vmem>>, vector<1x1x32x16xf32>
    %11 = vector.shape_cast %10 : vector<1x1x32x16xf32> to vector<32x16xf32>
    %cst_14 = arith.constant dense<0.000000e+00> : vector<32x64xf32>
    %12 = tpu.matmul %11, %1, %cst_14 {dimension_numbers = #tpu.dot_dimension_numbers<[1], [0], [0], [1], [0, 0, 1, 1], [], []>} : vector<32x16xf32>, vector<16x64xf32>, vector<32x64xf32> -> vector<32x64xf32>
    %c1_15 = arith.constant 1 : index
    %c0_16 = arith.constant 0 : index
    %c0_17 = arith.constant 0 : index
    %13 = vector.load %arg4[%c1_15, %c0_16, %c0_17] : memref<3x64x256xf32, #tpu.memory_space<vmem>>, vector<1x64x256xf32>
    %14 = vector.shape_cast %13 : vector<1x64x256xf32> to vector<64x256xf32>
    %cst_18 = arith.constant dense<0.000000e+00> : vector<32x256xf32>
    %15 = tpu.matmul %12, %14, %cst_18 {dimension_numbers = #tpu.dot_dimension_numbers<[1], [0], [0], [1], [0, 0, 1, 1], [], []>} : vector<32x64xf32>, vector<64x256xf32>, vector<32x256xf32> -> vector<32x256xf32>
    %16 = arith.addf %9, %15 : vector<32x256xf32>
    %c0_19 = arith.constant 0 : index
    %c2 = arith.constant 2 : index
    %c0_20 = arith.constant 0 : index
    %c0_21 = arith.constant 0 : index
    %17 = vector.load %arg2[%c0_19, %c2, %c0_20, %c0_21] : memref<1x3x32x16xf32, #tpu.memory_space<vmem>>, vector<1x1x32x16xf32>
    %18 = vector.shape_cast %17 : vector<1x1x32x16xf32> to vector<32x16xf32>
    %cst_22 = arith.constant dense<0.000000e+00> : vector<32x64xf32>
    %19 = tpu.matmul %18, %1, %cst_22 {dimension_numbers = #tpu.dot_dimension_numbers<[1], [0], [0], [1], [0, 0, 1, 1], [], []>} : vector<32x16xf32>, vector<16x64xf32>, vector<32x64xf32> -> vector<32x64xf32>
    %c2_23 = arith.constant 2 : index
    %c0_24 = arith.constant 0 : index
    %c0_25 = arith.constant 0 : index
    %20 = vector.load %arg4[%c2_23, %c0_24, %c0_25] : memref<3x64x256xf32, #tpu.memory_space<vmem>>, vector<1x64x256xf32>
    %21 = vector.shape_cast %20 : vector<1x64x256xf32> to vector<64x256xf32>
    %cst_26 = arith.constant dense<0.000000e+00> : vector<32x256xf32>
    %22 = tpu.matmul %19, %21, %cst_26 {dimension_numbers = #tpu.dot_dimension_numbers<[1], [0], [0], [1], [0, 0, 1, 1], [], []>} : vector<32x64xf32>, vector<64x256xf32>, vector<32x256xf32> -> vector<32x256xf32>
    %23 = arith.addf %16, %22 : vector<32x256xf32>
    %c0_27 = arith.constant 0 : index
    %c0_28 = arith.constant 0 : index
    %24 = vector.load %arg5[%c0_27, %c0_28] : memref<1x256xf32, #tpu.memory_space<vmem>>, vector<1x256xf32>
    %25 = vector.broadcast %24 : vector<1x256xf32> to vector<32x256xf32>
    %26 = arith.addf %23, %25 : vector<32x256xf32>
    %c0_29 = arith.constant 0 : index
    %c0_30 = arith.constant 0 : index
    %c0_31 = arith.constant 0 : index
    %27 = vector.load %arg6[%c0_29, %c0_30, %c0_31] : memref<1x32x256xf32, #tpu.memory_space<vmem>>, vector<1x32x256xf32>
    %28 = vector.shape_cast %27 : vector<1x32x256xf32> to vector<32x256xf32>
    %29 = vector.shape_cast %26 : vector<32x256xf32> to vector<1x32x256xf32>
    tpu.vector_store %arg6[%c0_29, %c0_30, %c0_31], %29 {strides = array<i32>} : memref<1x32x256xf32, #tpu.memory_space<vmem>>, vector<1x32x256xf32>,
    return
  }
  func.func @transform_0(%arg0: i32, %arg1: i32) -> (i32, i32, i32, i32) {
    %c0_i32 = arith.constant 0 : i32
    %c0_i32_0 = arith.constant 0 : i32
    %c0_i32_1 = arith.constant 0 : i32
    %c0_i32_2 = arith.constant 0 : i32
    return %arg1, %c0_i32, %c0_i32_0, %c0_i32_1 : i32, i32, i32, i32
  }
  func.func @transform_1(%arg0: i32, %arg1: i32) -> (i32, i32, i32) {
    %c0_i32 = arith.constant 0 : i32
    %c0_i32_0 = arith.constant 0 : i32
    return %arg0, %arg1, %c0_i32 : i32, i32, i32
  }
  func.func @transform_2(%arg0: i32, %arg1: i32) -> (i32, i32, i32) {
    %c0_i32 = arith.constant 0 : i32
    %c0_i32_0 = arith.constant 0 : i32
    %c0_i32_1 = arith.constant 0 : i32
    %c0_i32_2 = arith.constant 0 : i32
    return %c0_i32, %c0_i32_0, %c0_i32_1 : i32, i32, i32
  }
  func.func @transform_3(%arg0: i32, %arg1: i32) -> (i32, i32) {
    %c0_i32 = arith.constant 0 : i32
    %c0_i32_0 = arith.constant 0 : i32
    %c0_i32_1 = arith.constant 0 : i32
    return %c0_i32, %c0_i32_0 : i32, i32
  }
  func.func @transform_4(%arg0: i32, %arg1: i32) -> (i32, i32, i32) {
    %c0_i32 = arith.constant 0 : i32
    %c0_i32_0 = arith.constant 0 : i32
    return %arg0, %arg1, %c0_i32 : i32, i32, i32
  }
}

</mosaic_0001>

<llo_original>
// kernel: _lambda_.1
$region0: #{_lambda_.1}
  #allocation0 [shape = 'u32[]', space=smem, size = 0x4, offset = 0x4, fixed_abs, tag = 'smem constant byte address 0x4 - core index']
  #allocation1 [shape = 'u32[144,128]{1,0:T(1,128)}', space=vmem, size = 0x12000, scoped, tag = 'internal scratch']
  %s0 = inlined_call_operand.vmem [shape: f32[1,3,32,16], index: 0, kind: input, shape index: {}]
  %s1 = inlined_call_operand.vmem [shape: f32[2,16,64], index: 1, kind: input, shape index: {}]
  %s2 = inlined_call_operand.vmem [shape: f32[3,64,256], index: 2, kind: input, shape index: {}]
  %s3 = inlined_call_operand.vmem [shape: f32[1,256], index: 3, kind: input, shape index: {}]
  %s4 = inlined_call_operand.vmem [shape: f32[2,32,256], index: 4, kind: output, shape index: {}]
  %s5 = sld [smem:[#allocation0]]
  $region49: #{_lambda_.1} parent=0
    _
  %s7 = ssub.s32 1, %s5
  %s8 = scalar_select 0, %s7, %s5
  loop: start=0, step=1, limit=4
  $region2: #{_lambda_.1} parent=0 // loop_pre_header
    _
  $region3: #{_lambda_.1} parent=0 // loop_header
    %s10 = sphi 0, %s14
    %p11 = scmp.ge.s32.totalorder %s10, 4
    %s17 = sphi 0, %s29
    %s18 = sphi 0, %s25
    %s19 = sphi 0, %s17
    %s20 = sphi 0, %s18
    %s21 = sphi 0, %s19
    %s22 = sphi 0, %s20
    %s32 = sphi 0, %s34
    %s35 = sphi 0, %s32
    %s36 = sphi 0, %s35
    %s52 = sphi 0, %s36
    %s60 = sphi 0, %s62
    %s63 = sphi 0, %s60
    %s64 = sphi 0, %s63
    %s80 = sphi 0, %s64
    %s84 = sphi 0, %s84
    %s86 = sphi 0, %s84
    %s87 = sphi 0, %s86
    %s101 = sphi 0, %s87
    %s105 = sphi 0, %s105
    %s107 = sphi 0, %s105
    %s108 = sphi 0, %s107
    %s122 = sphi 0, %s108
    %s130 = sphi 0, %s132
    %s133 = sphi 0, %s130
    %s134 = sphi 0, %s133
    %s150 = sphi 0, %s134
  $region4: #{_lambda_.1} parent=0 // loop_header_branch
    %13 = sbr.rel (%p11) target = $region8
  $region5: #{_lambda_.1} parent=0 // loop_body
    %s15 = ssub.s32 %s10, 1
    %s16 = ssub.s32 %s10, 2
    %s23 = sadd.s32 1, %s18
    %p24 = scmp.ge.s32.totalorder %s23, 1
    %s25 = scalar_select %p24, 0, %s23
    %s26 = sadd.s32 1, %s17
    %s27 = scalar_select %p24, %s26, %s17
    %p28 = scmp.ge.s32.totalorder %s27, 2
    %s29 = scalar_select %p28, 0, %s27
    %s30 = ssub.s32 %s18, %s25
    %p31 = scmp.eq.s32.totalorder %s30, 0
    %s33 = sadd.s32 %s32, 1
    %s34 = scalar_select %p31, %s32, %s33
    %p37 = pneg %p31
    %p38 = scmp.eq.s32.totalorder %s10, 1
    %p39 = por %p37, %p38
    %p40 = scmp.ne.s32.totalorder %s32, %s35
    %p41 = scmp.eq.s32.totalorder %s10, 0
    %p42 = por %p40, %p41
    %p43 = scmp.ne.s32.totalorder %s32, %s35
    %p44 = scmp.eq.s32.totalorder %s15, 1
    %p45 = por %p43, %p44
    %p46 = scmp.ne.s32.totalorder %s35, %s36
    %p47 = scmp.eq.s32.totalorder %s15, 0
    %p48 = por %p46, %p47
    %p49 = scmp.ne.s32.totalorder %s35, %s36
    %p50 = scmp.eq.s32.totalorder %s16, 1
    %p51 = por %p49, %p50
    %p53 = scmp.ne.s32.totalorder %s36, %s52
    %p54 = scmp.eq.s32.totalorder %s16, 0
    %p55 = por %p53, %p54
    %s56 = ssub.s32 %s17, %s29
    %s57 = ssub.s32 %s18, %s25
    %s58 = sor.u32 %s56, %s57
    %p59 = scmp.eq.s32.totalorder %s58, 0
    %s61 = sadd.s32 %s60, 1
    %s62 = scalar_select %p59, %s60, %s61
    %p65 = pneg %p59
    %p66 = scmp.eq.s32.totalorder %s10, 1
    %p67 = por %p65, %p66
    %p68 = scmp.ne.s32.totalorder %s60, %s63
    %p69 = scmp.eq.s32.totalorder %s10, 0
    %p70 = por %p68, %p69
    %p71 = scmp.ne.s32.totalorder %s60, %s63
    %p72 = scmp.eq.s32.totalorder %s15, 1
    %p73 = por %p71, %p72
    %p74 = scmp.ne.s32.totalorder %s63, %s64
    %p75 = scmp.eq.s32.totalorder %s15, 0
    %p76 = por %p74, %p75
    %p77 = scmp.ne.s32.totalorder %s63, %s64
    %p78 = scmp.eq.s32.totalorder %s16, 1
    %p79 = por %p77, %p78
    %p81 = scmp.ne.s32.totalorder %s64, %s80
    %p82 = scmp.eq.s32.totalorder %s16, 0
    %p83 = por %p81, %p82
    %s85 = sadd.s32 %s84, 1
    %p88 = scmp.eq.s32.totalorder %s10, 1
    %p89 = scmp.ne.s32.totalorder %s84, %s86
    %p90 = scmp.eq.s32.totalorder %s10, 0
    %p91 = por %p89, %p90
    %p92 = scmp.ne.s32.totalorder %s84, %s86
    %p93 = scmp.eq.s32.totalorder %s15, 1
    %p94 = por %p92, %p93
    %p95 = scmp.ne.s32.totalorder %s86, %s87
    %p96 = scmp.eq.s32.totalorder %s15, 0
    %p97 = por %p95, %p96
    %p98 = scmp.ne.s32.totalorder %s86, %s87
    %p99 = scmp.eq.s32.totalorder %s16, 1
    %p100 = por %p98, %p99
    %p102 = scmp.ne.s32.totalorder %s87, %s101
    %p103 = scmp.eq.s32.totalorder %s16, 0
    %p104 = por %p102, %p103
    %s106 = sadd.s32 %s105, 1
    %p109 = scmp.eq.s32.totalorder %s10, 1
    %p110 = scmp.ne.s32.totalorder %s105, %s107
    %p111 = scmp.eq.s32.totalorder %s10, 0
    %p112 = por %p110, %p111
    %p113 = scmp.ne.s32.totalorder %s105, %s107
    %p114 = scmp.eq.s32.totalorder %s15, 1
    %p115 = por %p113, %p114
    %p116 = scmp.ne.s32.totalorder %s107, %s108
    %p117 = scmp.eq.s32.totalorder %s15, 0
    %p118 = por %p116, %p117
    %p119 = scmp.ne.s32.totalorder %s107, %s108
    %p120 = scmp.eq.s32.totalorder %s16, 1
    %p121 = por %p119, %p120
    %p123 = scmp.ne.s32.totalorder %s108, %s122
    %p124 = scmp.eq.s32.totalorder %s16, 0
    %p125 = por %p123, %p124
    %s126 = ssub.s32 %s17, %s29
    %s127 = ssub.s32 %s18, %s25
    %s128 = sor.u32 %s126, %s127
    %p129 = scmp.eq.s32.totalorder %s128, 0
    %s131 = sadd.s32 %s130, 1
    %s132 = scalar_select %p129, %s130, %s131
    %p135 = pneg %p129
    %p136 = scmp.eq.s32.totalorder %s10, 1
    %p137 = por %p135, %p136
    %p138 = scmp.ne.s32.totalorder %s130, %s133
    %p139 = scmp.eq.s32.totalorder %s10, 0
    %p140 = por %p138, %p139
    %p141 = scmp.ne.s32.totalorder %s130, %s133
    %p142 = scmp.eq.s32.totalorder %s15, 1
    %p143 = por %p141, %p142
    %p144 = scmp.ne.s32.totalorder %s133, %s134
    %p145 = scmp.eq.s32.totalorder %s15, 0
    %p146 = por %p144, %p145
    %p147 = scmp.ne.s32.totalorder %s133, %s134
    %p148 = scmp.eq.s32.totalorder %s16, 1
    %p149 = por %p147, %p148
    %p151 = scmp.ne.s32.totalorder %s134, %s150
    %p152 = scmp.eq.s32.totalorder %s16, 0
    %p153 = por %p151, %p152
    %p154 = scmp.le.s32.totalorder 1, %s10
    %p155 = scmp.lt.s32.totalorder %s10, 3
    %p156 = pnand %p154, %p155
    %p157 = pneg %p156
    // Predicated region
    $region9: #{_lambda_.1} parent=5 // pred_check
      _
    $region10: #{_lambda_.1} parent=5 // pred_check_branch
      %159 = sbr.rel (%p156) target = $region12
    $region11: #{_lambda_.1} parent=5 // pred_region
      %s160 = ssub.s32 %s10, 1
      // Predicated region
      $region13: #{_lambda_.1} parent=11 // pred_check
        %p161 = pneg %p48
      $region14: #{_lambda_.1} parent=11 // pred_check_branch
        %163 = sbr.rel (%p161) target = $region16
      $region15: #{_lambda_.1} parent=11 // pred_region
        %p164 = scmp.lt.s32.totalorder %s20, 0
        %s165 = scalar_select %p164, %s20, 0
        %s166 = smul.addr %s165, 12
        %s167 = smul.addr %s166, 8
        %s168 = scalar_lea.vmem %s0, %s167
      $region16: #{_lambda_.1} parent=11 // pred_fallthru
        _
      // Predicated region
      $region17: #{_lambda_.1} parent=11 // pred_check
        %p169 = pneg %p97
      $region18: #{_lambda_.1} parent=11 // pred_check_branch
        %171 = sbr.rel (%p169) target = $region20
      $region19: #{_lambda_.1} parent=11 // pred_region
        _
      $region20: #{_lambda_.1} parent=11 // pred_fallthru
        _
      // Predicated region
      $region21: #{_lambda_.1} parent=11 // pred_check
        %p172 = pneg %p118
      $region22: #{_lambda_.1} parent=11 // pred_check_branch
        %174 = sbr.rel (%p172) target = $region24
      $region23: #{_lambda_.1} parent=11 // pred_region
        _
      $region24: #{_lambda_.1} parent=11 // pred_fallthru
        _
    $region12: #{_lambda_.1} parent=5 // pred_fallthru
      _
    %p175 = scmp.lt.s32.totalorder %s10, 2
    // Predicated region
    $region25: #{_lambda_.1} parent=5 // pred_check
      %p176 = pneg %p175
    $region26: #{_lambda_.1} parent=5 // pred_check_branch
      %178 = sbr.rel (%p176) target = $region28
    $region27: #{_lambda_.1} parent=5 // pred_region
      // Predicated region
      $region29: #{_lambda_.1} parent=27 // pred_check
        %p179 = pneg %p70
      $region30: #{_lambda_.1} parent=27 // pred_check_branch
        %181 = sbr.rel (%p179) target = $region32
      $region31: #{_lambda_.1} parent=27 // pred_region
        %s182 = smul.u32 2, %s18
        %p183 = scmp.lt.s32.totalorder %s17, 1
        %s184 = scalar_select %p183, %s17, 1
        %p185 = scmp.lt.s32.totalorder %s182, 1
        %s186 = scalar_select %p185, %s182, 1
        %s187 = smul.addr %s184, 2
        %s188 = sadd.s32 %s186, %s187
        %s189 = smul.addr %s188, 8
        %s190 = scalar_lea.vmem %s1, %s189
        %s191 = smul.u32 2, %s18
      $region32: #{_lambda_.1} parent=27 // pred_fallthru
        _
    $region28: #{_lambda_.1} parent=5 // pred_fallthru
      _
    %p192 = scmp.le.s32.totalorder 1, %s10
    %p193 = scmp.lt.s32.totalorder %s10, 3
    %p194 = pnand %p192, %p193
    %p195 = pneg %p194
    // Predicated region
    $region33: #{_lambda_.1} parent=5 // pred_check
      _
    $region34: #{_lambda_.1} parent=5 // pred_check_branch
      %197 = sbr.rel (%p194) target = $region36
    $region35: #{_lambda_.1} parent=5 // pred_region
      %s198 = ssub.s32 %s10, 1
      %p199 = scmp.lt.s32.totalorder %s20, 0
      %s200 = scalar_select %p199, %s20, 0
      %s201 = smul.addr %s200, 12
      %s202 = smul.addr %s201, 8
      %s203 = scalar_lea.vmem %s0, %s202
      %p204 = pneg %p48
      %p205 = pneg %p45
      %s206 = smul.u32 2, %s20
      %p207 = scmp.lt.s32.totalorder %s19, 1
      %s208 = scalar_select %p207, %s19, 1
      %p209 = scmp.lt.s32.totalorder %s206, 1
      %s210 = scalar_select %p209, %s206, 1
      %s211 = smul.addr %s208, 2
      %s212 = sadd.s32 %s210, %s211
      %s213 = smul.addr %s212, 8
      %s214 = scalar_lea.vmem %s1, %s213
      %p215 = pneg %p76
      %p216 = pneg %p73
      %p217 = pneg %p97
      %p218 = pneg %p94
      %p219 = pneg %p118
      %p220 = pneg %p115
      %p221 = pneg %p146
      %p222 = pneg %p143
      %s223 = smul.u32 4, %s20
      %p224 = scmp.lt.s32.totalorder %s19, 1
      %s225 = scalar_select %p224, %s19, 1
      %p226 = scmp.lt.s32.totalorder %s223, 3
      %s227 = scalar_select %p226, %s223, 3
      %s228 = smul.addr %s227, 2
      %s229 = smul.addr %s225, 8
      %s230 = sadd.s32 %s228, %s229
      %s231 = smul.addr %s230, 8
      %s232 = scalar_lea.vmem %s4, %s231
      %p233 = scmp.lt.s32.totalorder %s20, 0
      %s234 = scalar_select %p233, %s20, 0
      %s235 = smul.addr %s234, 12
      %s236 = smul.addr %s235, 8
      %s237 = scalar_lea.vmem %s0, %s236
      %s238 = smul.u32 2, %s20
      %p239 = scmp.lt.s32.totalorder %s19, 1
      %s240 = scalar_select %p239, %s19, 1
      %p241 = scmp.lt.s32.totalorder %s238, 1
      %s242 = scalar_select %p241, %s238, 1
      %s243 = smul.addr %s240, 2
      %s244 = sadd.s32 %s242, %s243
      %s245 = smul.addr %s244, 8
      %s246 = scalar_lea.vmem %s1, %s245
      %s247 = smul.u32 2, %s20
      %s248 = smul.u32 4, %s20
      %p249 = scmp.lt.s32.totalorder %s19, 1
      %s250 = scalar_select %p249, %s19, 1
      %p251 = scmp.lt.s32.totalorder %s248, 3
      %s252 = scalar_select %p251, %s248, 3
      %s253 = smul.addr %s252, 2
      %s254 = smul.addr %s250, 8
      %s255 = sadd.s32 %s253, %s254
      %s256 = smul.addr %s255, 8
      %s257 = scalar_lea.vmem %s4, %s256
      %s258 = smul.u32 4, %s20
      %v259 = vld [vmem:[%s246] sm:$0xff]
      %v260 = vld [vmem:[%s246 + $0x8] sm:$0xff]
      %v261 = vld [vmem:[%s237] sm:$0xff]
      %v262 = vld [vmem:[%s237 + $0x8] sm:$0xff]
      %v263 = vld [vmem:[%s237 + $0x10] sm:$0xff]
      %v264 = vld [vmem:[%s237 + $0x18] sm:$0xff]
      %vm265 = vcmask 130048
      %v267 = vsel %vm265, %v261, 0
      %v270 = vsel %vm265, %v262, 0
      %v273 = vsel %vm265, %v263, 0
      %v276 = vsel %vm265, %v264, 0
      %278 = vmatprep.subr.mxu0 0.0
      %279 = vmatpush1.msra.mxu0 %v259
      %280 = vmatprep.subr.mxu0 0.0
      %281 = vmatpush1.msra.mxu0 %v260
      %282 = vmatprep.subr.mxu0 0.0
      %283 = vmatpush1.msra.mxu0 0.0
      %284 = vmatprep.subr.mxu0 0.0
      %285 = vmatpush1.msra.mxu0 0.0
      %286 = vmatprep.subr.mxu0 0.0
      %287 = vmatpush1.msra.mxu0 0.0
      %288 = vmatprep.subr.mxu0 0.0
      %289 = vmatpush1.msra.mxu0 0.0
      %290 = vmatprep.subr.mxu0 0.0
      %291 = vmatpush1.msra.mxu0 0.0
      %292 = vmatprep.subr.mxu0 0.0
      %293 = vmatpush1.msra.mxu0 0.0
      %294 = vmatprep.subr.mxu0 0.0
      %295 = vmatpush1.msra.mxu0 0.0
      %296 = vmatprep.subr.mxu0 0.0
      %297 = vmatpush1.msra.mxu0 0.0
      %298 = vmatprep.subr.mxu0 0.0
      %299 = vmatpush1.msra.mxu0 0.0
      %300 = vmatprep.subr.mxu0 0.0
      %301 = vmatpush1.msra.mxu0 0.0
      %302 = vmatprep.subr.mxu0 0.0
      %303 = vmatpush1.msra.mxu0 0.0
      %304 = vmatprep.subr.mxu0 0.0
      %305 = vmatpush1.msra.mxu0 0.0
      %306 = vmatprep.subr.mxu0 0.0
      %307 = vmatpush1.msra.mxu0 0.0
      %308 = vmatprep.subr.mxu0 0.0
      %309 = vmatpush1.msra.mxu0 0.0
      %310 = vmatprep.subr.mxu0 0.0
      %311 = vmatpush1.msra.mxu0 0.0
      %312 = vmatprep.subr.mxu0 0.0
      %313 = vmatpush1.msra.mxu0 0.0
      %314 = vmatprep.subr.mxu0 0.0
      %315 = vmatpush1.msra.mxu0 0.0
      %316 = vmatprep.subr.mxu0 0.0
      %317 = vmatpush1.msra.mxu0 0.0
      %318 = vmatprep.subr.mxu0 0.0
      %319 = vmatpush1.msra.mxu0 0.0
      %320 = vmatprep.subr.mxu0 0.0
      %321 = vmatpush1.msra.mxu0 0.0
      %322 = vmatprep.subr.mxu0 0.0
      %323 = vmatpush1.msra.mxu0 0.0
      %324 = vmatprep.subr.mxu0 0.0
      %325 = vmatpush1.msra.mxu0 0.0
      %326 = vmatprep.subr.mxu0 0.0
      %327 = vmatpush1.msra.mxu0 0.0
      %328 = vmatprep.subr.mxu0 0.0
      %329 = vmatpush1.msra.mxu0 0.0
      %330 = vmatprep.subr.mxu0 0.0
      %331 = vmatpush1.msra.mxu0 0.0
      %332 = vmatprep.subr.mxu0 0.0
      %333 = vmatpush1.msra.mxu0 0.0
      %334 = vmatprep.subr.mxu0 0.0
      %335 = vmatpush1.msra.mxu0 0.0
      %336 = vmatprep.subr.mxu0 0.0
      %337 = vmatpush1.msra.mxu0 0.0
      %338 = vmatprep.subr.mxu0 0.0
      %339 = vmatpush1.msra.mxu0 0.0
      %340 = vmatprep.subr.mxu0 0.0
      %341 = vmatpush1.msra.mxu0 0.0
      %342 = vmatprep.mubr.f32.mxu0 0.0
      %343 = vmatmul.mubr.f32.gmra.mrb[0].mxu0 %v267
      %v344 = vpop.f32.mrb[0].mxu0
      %v345 = vadd.f32 0.0, %v344
      %v346 = vpop.f32.mrb[0].mxu0
      %347 = vmatprep.mubr.f32.mxu0 0.0
      %348 = vmatmul.mubr.f32.gmra.mrb[0].mxu0 %v270
      %v349 = vpop.f32.mrb[0].mxu0
      %v350 = vadd.f32 0.0, %v349
      %v351 = vpop.f32.mrb[0].mxu0
      %352 = vmatprep.mubr.f32.mxu0 0.0
      %353 = vmatmul.mubr.f32.gmra.mrb[0].mxu0 %v273
      %v354 = vpop.f32.mrb[0].mxu0
      %v355 = vadd.f32 0.0, %v354
      %v356 = vpop.f32.mrb[0].mxu0
      %357 = vmatprep.mubr.f32.mxu0 0.0
      %358 = vmatmul.mubr.f32.gmra.mrb[0].mxu0 %v276
      %v359 = vpop.f32.mrb[0].mxu0
      %v360 = vadd.f32 0.0, %v359
      %v361 = vpop.f32.mrb[0].mxu0
      %362 = vdwg.mxu0
      %v363 = vld [vmem:[%s2] sm:$0xff]
      %v364 = vld [vmem:[%s2 + $0x8] sm:$0xff]
      %v365 = vld [vmem:[%s2 + $0x10] sm:$0xff]
      %v366 = vld [vmem:[%s2 + $0x18] sm:$0xff]
      %v367 = vld [vmem:[%s2 + $0x20] sm:$0xff]
      %v368 = vld [vmem:[%s2 + $0x28] sm:$0xff]
      %v369 = vld [vmem:[%s2 + $0x30] sm:$0xff]
      %v370 = vld [vmem:[%s2 + $0x38] sm:$0xff]
      %v371 = vld [vmem:[%s2 + $0x40] sm:$0xff]
      %v372 = vld [vmem:[%s2 + $0x48] sm:$0xff]
      %v373 = vld [vmem:[%s2 + $0x50] sm:$0xff]
      %v374 = vld [vmem:[%s2 + $0x58] sm:$0xff]
      %v375 = vld [vmem:[%s2 + $0x60] sm:$0xff]
      %v376 = vld [vmem:[%s2 + $0x68] sm:$0xff]
      %v377 = vld [vmem:[%s2 + $0x70] sm:$0xff]
      %v378 = vld [vmem:[%s2 + $0x78] sm:$0xff]
      %s379 = scalar_lea.vmem %s237, 32
      %v380 = vld [vmem:[%s379] sm:$0xff]
      %v381 = vld [vmem:[%s379 + $0x8] sm:$0xff]
      %v382 = vld [vmem:[%s379 + $0x10] sm:$0xff]
      %v383 = vld [vmem:[%s379 + $0x18] sm:$0xff]
      %v385 = vsel %vm265, %v380, 0
      %v388 = vsel %vm265, %v381, 0
      %v391 = vsel %vm265, %v382, 0
      %v394 = vsel %vm265, %v383, 0
      %396 = vmatprep.subr.mxu0 0.0
      %397 = vmatpush1.msra.mxu0 %v259
      %398 = vmatprep.subr.mxu0 0.0
      %399 = vmatpush1.msra.mxu0 %v260
      %400 = vmatprep.subr.mxu0 0.0
      %401 = vmatpush1.msra.mxu0 0.0
      %402 = vmatprep.subr.mxu0 0.0
      %403 = vmatpush1.msra.mxu0 0.0
      %404 = vmatprep.subr.mxu0 0.0
      %405 = vmatpush1.msra.mxu0 0.0
      %406 = vmatprep.subr.mxu0 0.0
      %407 = vmatpush1.msra.mxu0 0.0
      %408 = vmatprep.subr.mxu0 0.0
      %409 = vmatpush1.msra.mxu0 0.0
      %410 = vmatprep.subr.mxu0 0.0
      %411 = vmatpush1.msra.mxu0 0.0
      %412 = vmatprep.subr.mxu0 0.0
      %413 = vmatpush1.msra.mxu0 0.0
      %414 = vmatprep.subr.mxu0 0.0
      %415 = vmatpush1.msra.mxu0 0.0
      %416 = vmatprep.subr.mxu0 0.0
      %417 = vmatpush1.msra.mxu0 0.0
      %418 = vmatprep.subr.mxu0 0.0
      %419 = vmatpush1.msra.mxu0 0.0
      %420 = vmatprep.subr.mxu0 0.0
      %421 = vmatpush1.msra.mxu0 0.0
      %422 = vmatprep.subr.mxu0 0.0
      %423 = vmatpush1.msra.mxu0 0.0
      %424 = vmatprep.subr.mxu0 0.0
      %425 = vmatpush1.msra.mxu0 0.0
      %426 = vmatprep.subr.mxu0 0.0
      %427 = vmatpush1.msra.mxu0 0.0
      %428 = vmatprep.subr.mxu0 0.0
      %429 = vmatpush1.msra.mxu0 0.0
      %430 = vmatprep.subr.mxu0 0.0
      %431 = vmatpush1.msra.mxu0 0.0
      %432 = vmatprep.subr.mxu0 0.0
      %433 = vmatpush1.msra.mxu0 0.0
      %434 = vmatprep.subr.mxu0 0.0
      %435 = vmatpush1.msra.mxu0 0.0
      %436 = vmatprep.subr.mxu0 0.0
      %437 = vmatpush1.msra.mxu0 0.0
      %438 = vmatprep.subr.mxu0 0.0
      %439 = vmatpush1.msra.mxu0 0.0
      %440 = vmatprep.subr.mxu0 0.0
      %441 = vmatpush1.msra.mxu0 0.0
      %442 = vmatprep.subr.mxu0 0.0
      %443 = vmatpush1.msra.mxu0 0.0
      %444 = vmatprep.subr.mxu0 0.0
      %445 = vmatpush1.msra.mxu0 0.0
      %446 = vmatprep.subr.mxu0 0.0
      %447 = vmatpush1.msra.mxu0 0.0
      %448 = vmatprep.subr.mxu0 0.0
      %449 = vmatpush1.msra.mxu0 0.0
      %450 = vmatprep.subr.mxu0 0.0
      %451 = vmatpush1.msra.mxu0 0.0
      %452 = vmatprep.subr.mxu0 0.0
      %453 = vmatpush1.msra.mxu0 0.0
      %454 = vmatprep.subr.mxu0 0.0
      %455 = vmatpush1.msra.mxu0 0.0
      %456 = vmatprep.subr.mxu0 0.0
      %457 = vmatpush1.msra.mxu0 0.0
      %458 = vmatprep.subr.mxu0 0.0
      %459 = vmatpush1.msra.mxu0 0.0
      %460 = vmatprep.mubr.f32.mxu0 0.0
      %461 = vmatmul.mubr.f32.gmra.mrb[0].mxu0 %v385
      %v462 = vpop.f32.mrb[0].mxu0
      %v463 = vadd.f32 0.0, %v462
      %v464 = vpop.f32.mrb[0].mxu0
      %465 = vmatprep.mubr.f32.mxu0 0.0
      %466 = vmatmul.mubr.f32.gmra.mrb[0].mxu0 %v388
      %v467 = vpop.f32.mrb[0].mxu0
      %v468 = vadd.f32 0.0, %v467
      %v469 = vpop.f32.mrb[0].mxu0
      %470 = vmatprep.mubr.f32.mxu0 0.0
      %471 = vmatmul.mubr.f32.gmra.mrb[0].mxu0 %v391
      %v472 = vpop.f32.mrb[0].mxu0
      %v473 = vadd.f32 0.0, %v472
      %v474 = vpop.f32.mrb[0].mxu0
      %475 = vmatprep.mubr.f32.mxu0 0.0
      %476 = vmatmul.mubr.f32.gmra.mrb[0].mxu0 %v394
      %v477 = vpop.f32.mrb[0].mxu0
      %v478 = vadd.f32 0.0, %v477
      %v479 = vpop.f32.mrb[0].mxu0
      %480 = vdwg.mxu0
      %s481 = scalar_lea.vmem %s2, 128
      %v482 = vld [vmem:[%s481] sm:$0xff]
      %v483 = vld [vmem:[%s481 + $0x8] sm:$0xff]
      %v484 = vld [vmem:[%s481 + $0x10] sm:$0xff]
      %v485 = vld [vmem:[%s481 + $0x18] sm:$0xff]
      %v486 = vld [vmem:[%s481 + $0x20] sm:$0xff]
      %v487 = vld [vmem:[%s481 + $0x28] sm:$0xff]
      %v488 = vld [vmem:[%s481 + $0x30] sm:$0xff]
      %v489 = vld [vmem:[%s481 + $0x38] sm:$0xff]
      %v490 = vld [vmem:[%s481 + $0x40] sm:$0xff]
      %v491 = vld [vmem:[%s481 + $0x48] sm:$0xff]
      %v492 = vld [vmem:[%s481 + $0x50] sm:$0xff]
      %v493 = vld [vmem:[%s481 + $0x58] sm:$0xff]
      %v494 = vld [vmem:[%s481 + $0x60] sm:$0xff]
      %v495 = vld [vmem:[%s481 + $0x68] sm:$0xff]
      %v496 = vld [vmem:[%s481 + $0x70] sm:$0xff]
      %v497 = vld [vmem:[%s481 + $0x78] sm:$0xff]
      %vm498 = vcmask 523264
      %v500 = vsel %vm498, %v463, 0
      %v503 = vsel %vm498, %v468, 0
      %v506 = vsel %vm498, %v473, 0
      %v509 = vsel %vm498, %v478, 0
      %511 = vmatprep.subr.mxu0 %v483
      %512 = vmatpush1.msra.mxu0 %v482
      %513 = vmatprep.subr.mxu0 %v485
      %514 = vmatpush1.msra.mxu0 %v484
      %515 = vmatprep.subr.mxu0 %v487
      %516 = vmatpush1.msra.mxu0 %v486
      %517 = vmatprep.subr.mxu0 %v489
      %518 = vmatpush1.msra.mxu0 %v488
      %519 = vmatprep.subr.mxu0 %v491
      %520 = vmatpush1.msra.mxu0 %v490
      %521 = vmatprep.subr.mxu0 %v493
      %522 = vmatpush1.msra.mxu0 %v492
      %523 = vmatprep.subr.mxu0 %v495
      %524 = vmatpush1.msra.mxu0 %v494
      %525 = vmatprep.subr.mxu0 %v497
      %526 = vmatpush1.msra.mxu0 %v496
      %527 = vmatprep.subr.mxu0 0.0
      %528 = vmatpush1.msra.mxu0 0.0
      %529 = vmatprep.subr.mxu0 0.0
      %530 = vmatpush1.msra.mxu0 0.0
      %531 = vmatprep.subr.mxu0 0.0
      %532 = vmatpush1.msra.mxu0 0.0
      %533 = vmatprep.subr.mxu0 0.0
      %534 = vmatpush1.msra.mxu0 0.0
      %535 = vmatprep.subr.mxu0 0.0
      %536 = vmatpush1.msra.mxu0 0.0
      %537 = vmatprep.subr.mxu0 0.0
      %538 = vmatpush1.msra.mxu0 0.0
      %539 = vmatprep.subr.mxu0 0.0
      %540 = vmatpush1.msra.mxu0 0.0
      %541 = vmatprep.subr.mxu0 0.0
      %542 = vmatpush1.msra.mxu0 0.0
      %543 = vmatprep.subr.mxu0 0.0
      %544 = vmatpush1.msra.mxu0 0.0
      %545 = vmatprep.subr.mxu0 0.0
      %546 = vmatpush1.msra.mxu0 0.0
      %547 = vmatprep.subr.mxu0 0.0
      %548 = vmatpush1.msra.mxu0 0.0
      %549 = vmatprep.subr.mxu0 0.0
      %550 = vmatpush1.msra.mxu0 0.0
      %551 = vmatprep.subr.mxu0 0.0
      %552 = vmatpush1.msra.mxu0 0.0
      %553 = vmatprep.subr.mxu0 0.0
      %554 = vmatpush1.msra.mxu0 0.0
      %555 = vmatprep.subr.mxu0 0.0
      %556 = vmatpush1.msra.mxu0 0.0
      %557 = vmatprep.subr.mxu0 0.0
      %558 = vmatpush1.msra.mxu0 0.0
      %559 = vmatprep.subr.mxu0 0.0
      %560 = vmatpush1.msra.mxu0 0.0
      %561 = vmatprep.subr.mxu0 0.0
      %562 = vmatpush1.msra.mxu0 0.0
      %563 = vmatprep.subr.mxu0 0.0
      %564 = vmatpush1.msra.mxu0 0.0
      %565 = vmatprep.subr.mxu0 0.0
      %566 = vmatpush1.msra.mxu0 0.0
      %567 = vmatprep.subr.mxu0 0.0
      %568 = vmatpush1.msra.mxu0 0.0
      %569 = vmatprep.subr.mxu0 0.0
      %570 = vmatpush1.msra.mxu0 0.0
      %571 = vmatprep.subr.mxu0 0.0
      %572 = vmatpush1.msra.mxu0 0.0
      %573 = vmatprep.subr.mxu0 0.0
      %574 = vmatpush1.msra.mxu0 0.0
      %575 = vmatprep.mubr.f32.mxu0 0.0
      %576 = vmatmul.mubr.f32.gmra.mrb[0].mxu0 %v500
      %v577 = vpop.f32.mrb[0].mxu0
      %v578 = vadd.f32 0.0, %v577
      %v579 = vpop.f32.mrb[0].mxu0
      %v580 = vadd.f32 0.0, %v579
      %581 = vmatprep.mubr.f32.mxu0 0.0
      %582 = vmatmul.mubr.f32.gmra.mrb[0].mxu0 %v503
      %v583 = vpop.f32.mrb[0].mxu0
      %v584 = vadd.f32 0.0, %v583
      %v585 = vpop.f32.mrb[0].mxu0
      %v586 = vadd.f32 0.0, %v585
      %587 = vmatprep.mubr.f32.mxu0 0.0
      %588 = vmatmul.mubr.f32.gmra.mrb[0].mxu0 %v506
      %v589 = vpop.f32.mrb[0].mxu0
      %v590 = vadd.f32 0.0, %v589
      %v591 = vpop.f32.mrb[0].mxu0
      %v592 = vadd.f32 0.0, %v591
      %593 = vmatprep.mubr.f32.mxu0 0.0
      %594 = vmatmul.mubr.f32.gmra.mrb[0].mxu0 %v509
      %v595 = vpop.f32.mrb[0].mxu0
      %v596 = vadd.f32 0.0, %v595
      %v597 = vpop.f32.mrb[0].mxu0
      %v598 = vadd.f32 0.0, %v597
      %599 = vdwg.mxu0
      %v601 = vsel %vm498, %v345, 0
      %v604 = vsel %vm498, %v350, 0
      %v607 = vsel %vm498, %v355, 0
      %v610 = vsel %vm498, %v360, 0
      %612 = vmatprep.subr.mxu0 %v364
      %613 = vmatpush1.msra.mxu0 %v363
      %614 = vmatprep.subr.mxu0 %v366
      %615 = vmatpush1.msra.mxu0 %v365
      %616 = vmatprep.subr.mxu0 %v368
      %617 = vmatpush1.msra.mxu0 %v367
      %618 = vmatprep.subr.mxu0 %v370
      %619 = vmatpush1.msra.mxu0 %v369
      %620 = vmatprep.subr.mxu0 %v372
      %621 = vmatpush1.msra.mxu0 %v371
      %622 = vmatprep.subr.mxu0 %v374
      %623 = vmatpush1.msra.mxu0 %v373
      %624 = vmatprep.subr.mxu0 %v376
      %625 = vmatpush1.msra.mxu0 %v375
      %626 = vmatprep.subr.mxu0 %v378
      %627 = vmatpush1.msra.mxu0 %v377
      %628 = vmatprep.subr.mxu0 0.0
      %629 = vmatpush1.msra.mxu0 0.0
      %630 = vmatprep.subr.mxu0 0.0
      %631 = vmatpush1.msra.mxu0 0.0
      %632 = vmatprep.subr.mxu0 0.0
      %633 = vmatpush1.msra.mxu0 0.0
      %634 = vmatprep.subr.mxu0 0.0
      %635 = vmatpush1.msra.mxu0 0.0
      %636 = vmatprep.subr.mxu0 0.0
      %637 = vmatpush1.msra.mxu0 0.0
      %638 = vmatprep.subr.mxu0 0.0
      %639 = vmatpush1.msra.mxu0 0.0
      %640 = vmatprep.subr.mxu0 0.0
      %641 = vmatpush1.msra.mxu0 0.0
      %642 = vmatprep.subr.mxu0 0.0
      %643 = vmatpush1.msra.mxu0 0.0
      %644 = vmatprep.subr.mxu0 0.0
      %645 = vmatpush1.msra.mxu0 0.0
      %646 = vmatprep.subr.mxu0 0.0
      %647 = vmatpush1.msra.mxu0 0.0
      %648 = vmatprep.subr.mxu0 0.0
      %649 = vmatpush1.msra.mxu0 0.0
      %650 = vmatprep.subr.mxu0 0.0
      %651 = vmatpush1.msra.mxu0 0.0
      %652 = vmatprep.subr.mxu0 0.0
      %653 = vmatpush1.msra.mxu0 0.0
      %654 = vmatprep.subr.mxu0 0.0
      %655 = vmatpush1.msra.mxu0 0.0
      %656 = vmatprep.subr.mxu0 0.0
      %657 = vmatpush1.msra.mxu0 0.0
      %658 = vmatprep.subr.mxu0 0.0
      %659 = vmatpush1.msra.mxu0 0.0
      %660 = vmatprep.subr.mxu0 0.0
      %661 = vmatpush1.msra.mxu0 0.0
      %662 = vmatprep.subr.mxu0 0.0
      %663 = vmatpush1.msra.mxu0 0.0
      %664 = vmatprep.subr.mxu0 0.0
      %665 = vmatpush1.msra.mxu0 0.0
      %666 = vmatprep.subr.mxu0 0.0
      %667 = vmatpush1.msra.mxu0 0.0
      %668 = vmatprep.subr.mxu0 0.0
      %669 = vmatpush1.msra.mxu0 0.0
      %670 = vmatprep.subr.mxu0 0.0
      %671 = vmatpush1.msra.mxu0 0.0
      %672 = vmatprep.subr.mxu0 0.0
      %673 = vmatpush1.msra.mxu0 0.0
      %674 = vmatprep.subr.mxu0 0.0
      %675 = vmatpush1.msra.mxu0 0.0
      %676 = vmatprep.mubr.f32.mxu0 0.0
      %677 = vmatmul.mubr.f32.gmra.mrb[0].mxu0 %v601
      %v678 = vpop.f32.mrb[0].mxu0
      %v679 = vadd.f32 %v578, %v678
      %v680 = vpop.f32.mrb[0].mxu0
      %v681 = vadd.f32 %v580, %v680
      %682 = vmatprep.mubr.f32.mxu0 0.0
      %683 = vmatmul.mubr.f32.gmra.mrb[0].mxu0 %v604
      %v684 = vpop.f32.mrb[0].mxu0
      %v685 = vadd.f32 %v584, %v684
      %v686 = vpop.f32.mrb[0].mxu0
      %v687 = vadd.f32 %v586, %v686
      %688 = vmatprep.mubr.f32.mxu0 0.0
      %689 = vmatmul.mubr.f32.gmra.mrb[0].mxu0 %v607
      %v690 = vpop.f32.mrb[0].mxu0
      %v691 = vadd.f32 %v590, %v690
      %v692 = vpop.f32.mrb[0].mxu0
      %v693 = vadd.f32 %v592, %v692
      %694 = vmatprep.mubr.f32.mxu0 0.0
      %695 = vmatmul.mubr.f32.gmra.mrb[0].mxu0 %v610
      %v696 = vpop.f32.mrb[0].mxu0
      %v697 = vadd.f32 %v596, %v696
      %v698 = vpop.f32.mrb[0].mxu0
      %v699 = vadd.f32 %v598, %v698
      %700 = vdwg.mxu0
      %s701 = scalar_lea.vmem %s237, 64
      %v702 = vld [vmem:[%s701] sm:$0xff]
      %v703 = vld [vmem:[%s701 + $0x8] sm:$0xff]
      %v704 = vld [vmem:[%s701 + $0x10] sm:$0xff]
      %v705 = vld [vmem:[%s701 + $0x18] sm:$0xff]
      %v707 = vsel %vm265, %v702, 0
      %v710 = vsel %vm265, %v703, 0
      %v713 = vsel %vm265, %v704, 0
      %v716 = vsel %vm265, %v705, 0
      %718 = vmatprep.subr.mxu0 0.0
      %719 = vmatpush1.msra.mxu0 %v259
      %720 = vmatprep.subr.mxu0 0.0
      %721 = vmatpush1.msra.mxu0 %v260
      %722 = vmatprep.subr.mxu0 0.0
      %723 = vmatpush1.msra.mxu0 0.0
      %724 = vmatprep.subr.mxu0 0.0
      %725 = vmatpush1.msra.mxu0 0.0
      %726 = vmatprep.subr.mxu0 0.0
      %727 = vmatpush1.msra.mxu0 0.0
      %728 = vmatprep.subr.mxu0 0.0
      %729 = vmatpush1.msra.mxu0 0.0
      %730 = vmatprep.subr.mxu0 0.0
      %731 = vmatpush1.msra.mxu0 0.0
      %732 = vmatprep.subr.mxu0 0.0
      %733 = vmatpush1.msra.mxu0 0.0
      %734 = vmatprep.subr.mxu0 0.0
      %735 = vmatpush1.msra.mxu0 0.0
      %736 = vmatprep.subr.mxu0 0.0
      %737 = vmatpush1.msra.mxu0 0.0
      %738 = vmatprep.subr.mxu0 0.0
      %739 = vmatpush1.msra.mxu0 0.0
      %740 = vmatprep.subr.mxu0 0.0
      %741 = vmatpush1.msra.mxu0 0.0
      %742 = vmatprep.subr.mxu0 0.0
      %743 = vmatpush1.msra.mxu0 0.0
      %744 = vmatprep.subr.mxu0 0.0
      %745 = vmatpush1.msra.mxu0 0.0
      %746 = vmatprep.subr.mxu0 0.0
      %747 = vmatpush1.msra.mxu0 0.0
      %748 = vmatprep.subr.mxu0 0.0
      %749 = vmatpush1.msra.mxu0 0.0
      %750 = vmatprep.subr.mxu0 0.0
      %751 = vmatpush1.msra.mxu0 0.0
      %752 = vmatprep.subr.mxu0 0.0
      %753 = vmatpush1.msra.mxu0 0.0
      %754 = vmatprep.subr.mxu0 0.0
      %755 = vmatpush1.msra.mxu0 0.0
      %756 = vmatprep.subr.mxu0 0.0
      %757 = vmatpush1.msra.mxu0 0.0
      %758 = vmatprep.subr.mxu0 0.0
      %759 = vmatpush1.msra.mxu0 0.0
      %760 = vmatprep.subr.mxu0 0.0
      %761 = vmatpush1.msra.mxu0 0.0
      %762 = vmatprep.subr.mxu0 0.0
      %763 = vmatpush1.msra.mxu0 0.0
      %764 = vmatprep.subr.mxu0 0.0
      %765 = vmatpush1.msra.mxu0 0.0
      %766 = vmatprep.subr.mxu0 0.0
      %767 = vmatpush1.msra.mxu0 0.0
      %768 = vmatprep.subr.mxu0 0.0
      %769 = vmatpush1.msra.mxu0 0.0
      %770 = vmatprep.subr.mxu0 0.0
      %771 = vmatpush1.msra.mxu0 0.0
      %772 = vmatprep.subr.mxu0 0.0
      %773 = vmatpush1.msra.mxu0 0.0
      %774 = vmatprep.subr.mxu0 0.0
      %775 = vmatpush1.msra.mxu0 0.0
      %776 = vmatprep.subr.mxu0 0.0
      %777 = vmatpush1.msra.mxu0 0.0
      %778 = vmatprep.subr.mxu0 0.0
      %779 = vmatpush1.msra.mxu0 0.0
      %780 = vmatprep.subr.mxu0 0.0
      %781 = vmatpush1.msra.mxu0 0.0
      %782 = vmatprep.mubr.f32.mxu0 0.0
      %783 = vmatmul.mubr.f32.gmra.mrb[0].mxu0 %v707
      %v784 = vpop.f32.mrb[0].mxu0
      %v785 = vadd.f32 0.0, %v784
      %v786 = vpop.f32.mrb[0].mxu0
      %787 = vmatprep.mubr.f32.mxu0 0.0
      %788 = vmatmul.mubr.f32.gmra.mrb[0].mxu0 %v710
      %v789 = vpop.f32.mrb[0].mxu0
      %v790 = vadd.f32 0.0, %v789
      %v791 = vpop.f32.mrb[0].mxu0
      %792 = vmatprep.mubr.f32.mxu0 0.0
      %793 = vmatmul.mubr.f32.gmra.mrb[0].mxu0 %v713
      %v794 = vpop.f32.mrb[0].mxu0
      %v795 = vadd.f32 0.0, %v794
      %v796 = vpop.f32.mrb[0].mxu0
      %797 = vmatprep.mubr.f32.mxu0 0.0
      %798 = vmatmul.mubr.f32.gmra.mrb[0].mxu0 %v716
      %v799 = vpop.f32.mrb[0].mxu0
      %v800 = vadd.f32 0.0, %v799
      %v801 = vpop.f32.mrb[0].mxu0
      %802 = vdwg.mxu0
      %s803 = scalar_lea.vmem %s2, 256
      %v804 = vld [vmem:[%s803] sm:$0xff]
      %v805 = vld [vmem:[%s803 + $0x8] sm:$0xff]
      %v806 = vld [vmem:[%s803 + $0x10] sm:$0xff]
      %v807 = vld [vmem:[%s803 + $0x18] sm:$0xff]
      %v808 = vld [vmem:[%s803 + $0x20] sm:$0xff]
      %v809 = vld [vmem:[%s803 + $0x28] sm:$0xff]
      %v810 = vld [vmem:[%s803 + $0x30] sm:$0xff]
      %v811 = vld [vmem:[%s803 + $0x38] sm:$0xff]
      %v812 = vld [vmem:[%s803 + $0x40] sm:$0xff]
      %v813 = vld [vmem:[%s803 + $0x48] sm:$0xff]
      %v814 = vld [vmem:[%s803 + $0x50] sm:$0xff]
      %v815 = vld [vmem:[%s803 + $0x58] sm:$0xff]
      %v816 = vld [vmem:[%s803 + $0x60] sm:$0xff]
      %v817 = vld [vmem:[%s803 + $0x68] sm:$0xff]
      %v818 = vld [vmem:[%s803 + $0x70] sm:$0xff]
      %v819 = vld [vmem:[%s803 + $0x78] sm:$0xff]
      %v821 = vsel %vm498, %v785, 0
      %v824 = vsel %vm498, %v790, 0
      %v827 = vsel %vm498, %v795, 0
      %v830 = vsel %vm498, %v800, 0
      %832 = vmatprep.subr.mxu0 %v805
      %833 = vmatpush1.msra.mxu0 %v804
      %834 = vmatprep.subr.mxu0 %v807
      %835 = vmatpush1.msra.mxu0 %v806
      %836 = vmatprep.subr.mxu0 %v809
      %837 = vmatpush1.msra.mxu0 %v808
      %838 = vmatprep.subr.mxu0 %v811
      %839 = vmatpush1.msra.mxu0 %v810
      %840 = vmatprep.subr.mxu0 %v813
      %841 = vmatpush1.msra.mxu0 %v812
      %842 = vmatprep.subr.mxu0 %v815
      %843 = vmatpush1.msra.mxu0 %v814
      %844 = vmatprep.subr.mxu0 %v817
      %845 = vmatpush1.msra.mxu0 %v816
      %846 = vmatprep.subr.mxu0 %v819
      %847 = vmatpush1.msra.mxu0 %v818
      %848 = vmatprep.subr.mxu0 0.0
      %849 = vmatpush1.msra.mxu0 0.0
      %850 = vmatprep.subr.mxu0 0.0
      %851 = vmatpush1.msra.mxu0 0.0
      %852 = vmatprep.subr.mxu0 0.0
      %853 = vmatpush1.msra.mxu0 0.0
      %854 = vmatprep.subr.mxu0 0.0
      %855 = vmatpush1.msra.mxu0 0.0
      %856 = vmatprep.subr.mxu0 0.0
      %857 = vmatpush1.msra.mxu0 0.0
      %858 = vmatprep.subr.mxu0 0.0
      %859 = vmatpush1.msra.mxu0 0.0
      %860 = vmatprep.subr.mxu0 0.0
      %861 = vmatpush1.msra.mxu0 0.0
      %862 = vmatprep.subr.mxu0 0.0
      %863 = vmatpush1.msra.mxu0 0.0
      %864 = vmatprep.subr.mxu0 0.0
      %865 = vmatpush1.msra.mxu0 0.0
      %866 = vmatprep.subr.mxu0 0.0
      %867 = vmatpush1.msra.mxu0 0.0
      %868 = vmatprep.subr.mxu0 0.0
      %869 = vmatpush1.msra.mxu0 0.0
      %870 = vmatprep.subr.mxu0 0.0
      %871 = vmatpush1.msra.mxu0 0.0
      %872 = vmatprep.subr.mxu0 0.0
      %873 = vmatpush1.msra.mxu0 0.0
      %874 = vmatprep.subr.mxu0 0.0
      %875 = vmatpush1.msra.mxu0 0.0
      %876 = vmatprep.subr.mxu0 0.0
      %877 = vmatpush1.msra.mxu0 0.0
      %878 = vmatprep.subr.mxu0 0.0
      %879 = vmatpush1.msra.mxu0 0.0
      %880 = vmatprep.subr.mxu0 0.0
      %881 = vmatpush1.msra.mxu0 0.0
      %882 = vmatprep.subr.mxu0 0.0
      %883 = vmatpush1.msra.mxu0 0.0
      %884 = vmatprep.subr.mxu0 0.0
      %885 = vmatpush1.msra.mxu0 0.0
      %886 = vmatprep.subr.mxu0 0.0
      %887 = vmatpush1.msra.mxu0 0.0
      %888 = vmatprep.subr.mxu0 0.0
      %889 = vmatpush1.msra.mxu0 0.0
      %890 = vmatprep.subr.mxu0 0.0
      %891 = vmatpush1.msra.mxu0 0.0
      %892 = vmatprep.subr.mxu0 0.0
      %893 = vmatpush1.msra.mxu0 0.0
      %894 = vmatprep.subr.mxu0 0.0
      %895 = vmatpush1.msra.mxu0 0.0
      %896 = vmatprep.mubr.f32.mxu0 0.0
      %897 = vmatmul.mubr.f32.gmra.mrb[0].mxu0 %v821
      %v898 = vpop.f32.mrb[0].mxu0
      %v899 = vadd.f32 0.0, %v898
      %v900 = vpop.f32.mrb[0].mxu0
      %v901 = vadd.f32 0.0, %v900
      %902 = vmatprep.mubr.f32.mxu0 0.0
      %903 = vmatmul.mubr.f32.gmra.mrb[0].mxu0 %v824
      %v904 = vpop.f32.mrb[0].mxu0
      %v905 = vadd.f32 0.0, %v904
      %v906 = vpop.f32.mrb[0].mxu0
      %v907 = vadd.f32 0.0, %v906
      %908 = vmatprep.mubr.f32.mxu0 0.0
      %909 = vmatmul.mubr.f32.gmra.mrb[0].mxu0 %v827
      %v910 = vpop.f32.mrb[0].mxu0
      %v911 = vadd.f32 0.0, %v910
      %v912 = vpop.f32.mrb[0].mxu0
      %v913 = vadd.f32 0.0, %v912
      %914 = vmatprep.mubr.f32.mxu0 0.0
      %915 = vmatmul.mubr.f32.gmra.mrb[0].mxu0 %v830
      %v916 = vpop.f32.mrb[0].mxu0
      %v917 = vadd.f32 0.0, %v916
      %v918 = vpop.f32.mrb[0].mxu0
      %v919 = vadd.f32 0.0, %v918
      %920 = vdwg.mxu0
      %v921 = vadd.f32 %v679, %v899
      %v922 = vadd.f32 %v681, %v901
      %v923 = vadd.f32 %v685, %v905
      %v924 = vadd.f32 %v687, %v907
      %v925 = vadd.f32 %v691, %v911
      %v926 = vadd.f32 %v693, %v913
      %v927 = vadd.f32 %v697, %v917
      %v928 = vadd.f32 %v699, %v919
      %v929 = vld [vmem:[%s3] sm:$0x3]
      %v931 = vlaneseq
      %v932 = vshrl.u32 %v931, 7
      %v933 = vsub.s32 0, %v932
      %v934 = vrot.slane %v929, %v933
      %v935 = vlaneseq
      %v936 = vshrl.u32 %v935, 7
      %v937 = vsub.s32 1, %v936
      %v938 = vrot.slane %v929, %v937
      %v941 = vadd.f32 %v921, %v934
      %v942 = vadd.f32 %v922, %v938
      %v943 = vadd.f32 %v923, %v934
      %v944 = vadd.f32 %v924, %v938
      %v945 = vadd.f32 %v925, %v934
      %v946 = vadd.f32 %v926, %v938
      %v947 = vadd.f32 %v927, %v934
      %v948 = vadd.f32 %v928, %v938
      %949 = vst [vmem:[%s257] sm:$0xff] %v941
      %950 = vst [vmem:[%s257 + $0x8] sm:$0xff] %v942
      %951 = vst [vmem:[%s257 + $0x10] sm:$0xff] %v943
      %952 = vst [vmem:[%s257 + $0x18] sm:$0xff] %v944
      %953 = vst [vmem:[%s257 + $0x20] sm:$0xff] %v945
      %954 = vst [vmem:[%s257 + $0x28] sm:$0xff] %v946
      %955 = vst [vmem:[%s257 + $0x30] sm:$0xff] %v947
      %956 = vst [vmem:[%s257 + $0x38] sm:$0xff] %v948
      %s957 = smul.u32 4, %s20
      %p958 = scmp.lt.s32.totalorder %s19, 1
      %s959 = scalar_select %p958, %s19, 1
      %p960 = scmp.lt.s32.totalorder %s957, 3
      %s961 = scalar_select %p960, %s957, 3
      %s962 = smul.addr %s961, 2
      %s963 = smul.addr %s959, 8
      %s964 = sadd.s32 %s962, %s963
      %s965 = smul.addr %s964, 8
      %s966 = scalar_lea.vmem %s4, %s965
      // Predicated region
      $region37: #{_lambda_.1} parent=35 // pred_check
        %p967 = pneg %p143
      $region38: #{_lambda_.1} parent=35 // pred_check_branch
        %969 = sbr.rel (%p967) target = $region40
      $region39: #{_lambda_.1} parent=35 // pred_region
        %s970 = smul.u32 4, %s20
      $region40: #{_lambda_.1} parent=35 // pred_fallthru
        _
    $region36: #{_lambda_.1} parent=5 // pred_fallthru
      _
    %p971 = scmp.le.s32.totalorder 2, %s10
    // Predicated region
    $region41: #{_lambda_.1} parent=5 // pred_check
      %p972 = pneg %p971
    $region42: #{_lambda_.1} parent=5 // pred_check_branch
      %974 = sbr.rel (%p972) target = $region44
    $region43: #{_lambda_.1} parent=5 // pred_region
      %s975 = ssub.s32 %s10, 2
      // Predicated region
      $region45: #{_lambda_.1} parent=43 // pred_check
        %p976 = pneg %p149
      $region46: #{_lambda_.1} parent=43 // pred_check_branch
        %978 = sbr.rel (%p976) target = $region48
      $region47: #{_lambda_.1} parent=43 // pred_region
        %s979 = smul.u32 4, %s22
        %p980 = scmp.lt.s32.totalorder %s21, 1
        %s981 = scalar_select %p980, %s21, 1
        %p982 = scmp.lt.s32.totalorder %s979, 3
        %s983 = scalar_select %p982, %s979, 3
        %s984 = smul.addr %s983, 2
        %s985 = smul.addr %s981, 8
        %s986 = sadd.s32 %s984, %s985
        %s987 = smul.addr %s986, 8
        %s988 = scalar_lea.vmem %s4, %s987
      $region48: #{_lambda_.1} parent=43 // pred_fallthru
        _
    $region44: #{_lambda_.1} parent=5 // pred_fallthru
      _
  $region6: #{_lambda_.1} parent=0 // loop_footer
    %s14 = sadd.s32 1, %s10
  $region7: #{_lambda_.1} parent=0 // loop_footer_branch
    %9 = sbr.rel target = $region3
  $region8: #{_lambda_.1} parent=0 // loop_exit
    _

</llo_original>
